<compile_context>
chip_gen: v7x
topology: tpu7x:2x2x1
jax: 0.10.0
libtpu: 0.0.40
codegen_flags: <defaults>
</compile_context>

<pallas_src>
import functools

import jax
import jax.numpy as jnp
from jax.experimental import pallas as pl
from jax.experimental.pallas import tpu as pltpu


def _ceil_to(n, m):
    return ((n + m - 1) // m) * m


def _net1d_kernel(xt_ref, w1_ref, b1_ref, w2_ref, b2_ref, w3_ref, b3_ref, o_ref,
                  *, chunk):
    """One batch tile, transposed layout: samples on lanes, features on sublanes.

    xt_ref : [in_f, tile]    w1_ref : [hid, in_f]    b1_ref : [hid, 1]
    w2_ref : [hid, hid]      b2_ref : [hid, 1]
    w3_ref : [out_f, hid]    b3_ref : [out_f, 1]     o_ref  : [out_f, tile]
    """
    in_f, tile = xt_ref.shape
    n_chunks = tile // chunk

    # Load the (tiny) weights once per tile; they stay vreg/VMEM resident.
    w1 = w1_ref[...]
    b1 = b1_ref[...]
    w2 = w2_ref[...]
    b2 = b2_ref[...]
    w3 = w3_ref[...]
    b3 = b3_ref[...]

    # Static unroll over lane chunks: all slices are compile-time constants and
    # each chunk's intermediates die at its store, so the LLO scheduler can
    # overlap EUP tanh of chunk c with the MXU matmul of chunk c+-1.
    for c in range(n_chunks):
        lo = c * chunk
        x = xt_ref[:, lo:lo + chunk]                      # [in_f, chunk]

        # ---- Layer 1: tiny contraction (K = in_f ~ 2) -> VPU broadcast FMAs,
        # keeps the MXU free for layers 2/3.
        if in_f <= 8:
            acc = b1 + w1[:, 0:1] * x[0:1, :]             # [hid, chunk]
            for k in range(1, in_f):                      # static unroll
                acc = acc + w1[:, k:k + 1] * x[k:k + 1, :]
        else:
            acc = jnp.dot(w1, x, preferred_element_type=jnp.float32) + b1
        h1 = jnp.tanh(acc)                                # [hid, chunk]

        # ---- Layer 2: square hidden matmul -> MXU, f32 accumulation.
        h2 = jnp.tanh(
            jnp.dot(w2, h1, preferred_element_type=jnp.float32) + b2
        )                                                 # [hid, chunk]

        # ---- Layer 3: [out_f, hid] x [hid, chunk] -> MXU (nearly idle, so this
        # is effectively free); lane-dense [out_f, chunk] store.
        y = jnp.dot(w3, h2, preferred_element_type=jnp.float32) + b3
        o_ref[:, lo:lo + chunk] = y


@functools.partial(jax.jit, static_argnames=("tile_m", "chunk_m"))
def net1d_forward_xt(xt, params, tile_m=8192, chunk_m=512):
    """Net1D forward; xt is already transposed: [in_f, B] float32.

    Returns [out_f, B] float32.  Use this entry point when the caller can keep
    collocation points in [in_f, B] layout to avoid a per-call HBM transpose.
    """
    w1, b1 = params["w1"], params["b1"]
    w2, b2 = params["w2"], params["b2"]
    w3, b3 = params["w3"], params["b3"]

    in_f, B = xt.shape
    hid = w1.shape[0]
    out_f = w3.shape[0]

    lane = 128
    # Batch tile: multiple of 128 lanes, large enough to amortize the per-step
    # grid overhead, but capped so the grid has >= 2 steps whenever B allows
    # (v7x dual TensorCore + DMA/compute overlap).  Per-tile VMEM footprint is
    # ~0.5 KB/sample, far below even v7x's 64 MiB.
    two_step_cap = _ceil_to(max((B + 1) // 2, lane), lane)
    tile = max(lane, min(_ceil_to(tile_m, lane), two_step_cap))

    # Inner lane-chunk size: multiple of 128 that divides the tile.
    chunk = max(lane, min(_ceil_to(chunk_m, lane), tile))
    while tile % chunk:
        chunk -= lane

    grid = (pl.cdiv(B, tile),)  # ragged last block handled by Pallas (masked writeback)

    const = lambda shape: pl.BlockSpec(shape, lambda i: (0, 0))
    kernel = functools.partial(_net1d_kernel, chunk=chunk)

    out_t = pl.pallas_call(
        kernel,
        out_shape=jax.ShapeDtypeStruct((out_f, B), jnp.float32),
        grid_spec=pltpu.PrefetchScalarGridSpec(
            num_scalar_prefetch=0,
            grid=grid,
            in_specs=[
                pl.BlockSpec((in_f, tile), lambda i: (0, i)),   # x (transposed)
                const((hid, in_f)),                             # W1 [out, in]
                const((hid, 1)),                                # b1
                const((hid, hid)),                              # W2 [out, in]
                const((hid, 1)),                                # b2
                const((out_f, hid)),                            # W3 [out, in]
                const((out_f, 1)),                              # b3
            ],
            out_specs=pl.BlockSpec((out_f, tile), lambda i: (0, i)),
        ),
        compiler_params=pltpu.CompilerParams(
            dimension_semantics=("parallel",),
            vmem_limit_bytes=32 * 1024 * 1024,   # safe on v5e/v6e (128 MiB) and v7x (64 MiB)
        ),
    )(
        xt.astype(jnp.float32),
        w1,
        b1.reshape(hid, 1),
        w2,
        b2.reshape(hid, 1),
        w3,
        b3.reshape(out_f, 1),
    )
    return out_t


def net1d_forward(x, params, tile_m=8192, chunk_m=512):
    """Torch-layout interface: x [B, in_f] -> [B, out_f].

    NOTE: the transpose below is a separate un-fused HBM pass per call; for
    large collocation batches prefer feeding net1d_forward_xt with [in_f, B]
    data produced upstream in that layout.
    """
    out_t = net1d_forward_xt(x.astype(jnp.float32).T, params,
                             tile_m=tile_m, chunk_m=chunk_m)
    return out_t.T


def init_net1d_params(key, input_size, hidden_size, output_size):
    """Xavier-normal weights, zero biases, torch [out, in] layout."""

    def xavier_normal(k, fan_out, fan_in):
        std = jnp.sqrt(jnp.float32(2.0 / (fan_in + fan_out)))
        return std * jax.random.normal(k, (fan_out, fan_in), dtype=jnp.float32)

    k1, k2, k3 = jax.random.split(key, 3)
    return {
        "w1": xavier_normal(k1, hidden_size, input_size),
        "b1": jnp.zeros((hidden_size,), jnp.float32),
        "w2": xavier_normal(k2, hidden_size, hidden_size),
        "b2": jnp.zeros((hidden_size,), jnp.float32),
        "w3": xavier_normal(k3, output_size, hidden_size),
        "b3": jnp.zeros((output_size,), jnp.float32),
    }


def net1d_reference(x, params):
    """Pure-JAX f32 reference (torch semantics: y = x @ W.T + b)."""
    hp = jax.lax.Precision.HIGHEST
    h = jnp.tanh(jnp.dot(x, params["w1"].T, precision=hp) + params["b1"])
    h = jnp.tanh(jnp.dot(h, params["w2"].T, precision=hp) + params["b2"])
    return jnp.dot(h, params["w3"].T, precision=hp) + params["b3"]


if __name__ == "__main__":
    # Typical 1D PINN: (x, t) coordinates -> scalar field u(x, t).  Small shapes.
    batch, input_size, hidden_size, output_size = 1000, 2, 32, 1

    key = jax.random.PRNGKey(0)
    kx, kp = jax.random.split(key)

    x = jax.random.normal(kx, (batch, input_size), dtype=jnp.float32)
    params = init_net1d_params(kp, input_size, hidden_size, output_size)

    # tile_m=512 -> tile=512, grid=(2,) with a ragged last block (488 valid
    # lanes, masked writeback); chunk_m=128 -> 4 inner lane chunks per tile.
    # Exercises the multi-step grid, the no-pad ragged path and the chunk loop.
    y = net1d_forward(x, params, tile_m=512, chunk_m=128)
    jax.block_until_ready(y)

    y_ref = net1d_reference(x, params)
    assert y.shape == (batch, output_size)
    max_err = float(jnp.max(jnp.abs(y - y_ref)))
    # In-kernel f32 matmuls use MXU multi-pass accumulation; tolerance covers
    # the small deviation from the HIGHEST-precision reference.
    assert jnp.allclose(y, y_ref, atol=3e-5, rtol=3e-5), (
        f"mismatch vs reference: max abs err {max_err:.3e}"
    )

    print("KERNEL_OK")
</pallas_src>

<mosaic_0001>
module attributes {stable_mosaic.version = 11 : i64} {
  func.func @_net1d_kernel(%arg0: i32, %arg1: memref<2x512xf32, #tpu.memory_space<vmem>>, %arg2: memref<32x2xf32, #tpu.memory_space<vmem>>, %arg3: memref<32x1xf32, #tpu.memory_space<vmem>>, %arg4: memref<32x32xf32, #tpu.memory_space<vmem>>, %arg5: memref<32x1xf32, #tpu.memory_space<vmem>>, %arg6: memref<1x32xf32, #tpu.memory_space<vmem>>, %arg7: memref<1x1xf32, #tpu.memory_space<vmem>>, %arg8: memref<1x512xf32, #tpu.memory_space<vmem>>) attributes {dimension_semantics = [#tpu.dimension_semantics<parallel>], iteration_bounds = array<i64: 2>, scalar_prefetch = 0 : i64, scratch_operands = 0 : i64, tpu.core_type = #tpu.core_type<tc>, window_params = [{transform_indices = @transform_0, window_bounds = array<i64: 2, 512>}, {pipeline_mode = #tpu.pipeline_mode<synchronous>, transform_indices = @transform_1, window_bounds = array<i64: 32, 2>}, {pipeline_mode = #tpu.pipeline_mode<synchronous>, transform_indices = @transform_2, window_bounds = array<i64: 32, 1>}, {pipeline_mode = #tpu.pipeline_mode<synchronous>, transform_indices = @transform_3, window_bounds = array<i64: 32, 32>}, {pipeline_mode = #tpu.pipeline_mode<synchronous>, transform_indices = @transform_4, window_bounds = array<i64: 32, 1>}, {pipeline_mode = #tpu.pipeline_mode<synchronous>, transform_indices = @transform_5, window_bounds = array<i64: 1, 32>}, {pipeline_mode = #tpu.pipeline_mode<synchronous>, transform_indices = @transform_6, window_bounds = array<i64: 1, 1>}, {transform_indices = @transform_7, window_bounds = array<i64: 1, 512>}]} {
    %c0 = arith.constant 0 : index
    %c0_0 = arith.constant 0 : index
    %0 = vector.load %arg2[%c0, %c0_0] : memref<32x2xf32, #tpu.memory_space<vmem>>, vector<32x2xf32>
    %c0_1 = arith.constant 0 : index
    %c0_2 = arith.constant 0 : index
    %1 = vector.load %arg3[%c0_1, %c0_2] : memref<32x1xf32, #tpu.memory_space<vmem>>, vector<32x1xf32>
    %c0_3 = arith.constant 0 : index
    %c0_4 = arith.constant 0 : index
    %2 = vector.load %arg4[%c0_3, %c0_4] : memref<32x32xf32, #tpu.memory_space<vmem>>, vector<32x32xf32>
    %c0_5 = arith.constant 0 : index
    %c0_6 = arith.constant 0 : index
    %3 = vector.load %arg5[%c0_5, %c0_6] : memref<32x1xf32, #tpu.memory_space<vmem>>, vector<32x1xf32>
    %c0_7 = arith.constant 0 : index
    %c0_8 = arith.constant 0 : index
    %4 = vector.load %arg6[%c0_7, %c0_8] : memref<1x32xf32, #tpu.memory_space<vmem>>, vector<1x32xf32>
    %c0_9 = arith.constant 0 : index
    %c0_10 = arith.constant 0 : index
    %5 = vector.load %arg7[%c0_9, %c0_10] : memref<1x1xf32, #tpu.memory_space<vmem>>, vector<1x1xf32>
    %c0_11 = arith.constant 0 : index
    %c0_12 = arith.constant 0 : index
    %6 = vector.load %arg1[%c0_11, %c0_12] : memref<2x512xf32, #tpu.memory_space<vmem>>, vector<2x128xf32>
    %7 = vector.extract_strided_slice %0 {offsets = [0, 0], sizes = [32, 1], strides = [1, 1]} : vector<32x2xf32> to vector<32x1xf32>
    %8 = vector.extract_strided_slice %6 {offsets = [0, 0], sizes = [1, 128], strides = [1, 1]} : vector<2x128xf32> to vector<1x128xf32>
    %9 = vector.broadcast %7 : vector<32x1xf32> to vector<32x128xf32>
    %10 = vector.broadcast %8 : vector<1x128xf32> to vector<32x128xf32>
    %11 = arith.mulf %9, %10 : vector<32x128xf32>
    %12 = vector.broadcast %1 : vector<32x1xf32> to vector<32x128xf32>
    %13 = arith.addf %12, %11 : vector<32x128xf32>
    %14 = vector.extract_strided_slice %0 {offsets = [0, 1], sizes = [32, 1], strides = [1, 1]} : vector<32x2xf32> to vector<32x1xf32>
    %15 = vector.extract_strided_slice %6 {offsets = [1, 0], sizes = [1, 128], strides = [1, 1]} : vector<2x128xf32> to vector<1x128xf32>
    %16 = vector.broadcast %14 : vector<32x1xf32> to vector<32x128xf32>
    %17 = vector.broadcast %15 : vector<1x128xf32> to vector<32x128xf32>
    %18 = arith.mulf %16, %17 : vector<32x128xf32>
    %19 = arith.addf %13, %18 : vector<32x128xf32>
    %20 = math.tanh %19 : vector<32x128xf32>
    %cst = arith.constant dense<0.000000e+00> : vector<32x128xf32>
    %21 = tpu.matmul %2, %20, %cst {dimension_numbers = #tpu.dot_dimension_numbers<[1], [0], [0], [1], [0, 0, 1, 1], [], []>} : vector<32x32xf32>, vector<32x128xf32>, vector<32x128xf32> -> vector<32x128xf32>
    %22 = vector.broadcast %3 : vector<32x1xf32> to vector<32x128xf32>
    %23 = arith.addf %21, %22 : vector<32x128xf32>
    %24 = math.tanh %23 : vector<32x128xf32>
    %cst_13 = arith.constant dense<0.000000e+00> : vector<1x128xf32>
    %25 = tpu.matmul %4, %24, %cst_13 {dimension_numbers = #tpu.dot_dimension_numbers<[1], [0], [0], [1], [0, 0, 1, 1], [], []>} : vector<1x32xf32>, vector<32x128xf32>, vector<1x128xf32> -> vector<1x128xf32>
    %26 = vector.broadcast %5 : vector<1x1xf32> to vector<1x128xf32>
    %27 = arith.addf %25, %26 : vector<1x128xf32>
    %c0_14 = arith.constant 0 : index
    %c0_15 = arith.constant 0 : index
    %28 = vector.load %arg8[%c0_14, %c0_15] : memref<1x512xf32, #tpu.memory_space<vmem>>, vector<1x128xf32>
    tpu.vector_store %arg8[%c0_14, %c0_15], %27 {strides = array<i32>} : memref<1x512xf32, #tpu.memory_space<vmem>>, vector<1x128xf32>,
    %c0_16 = arith.constant 0 : index
    %c128 = arith.constant 128 : index
    %29 = vector.load %arg1[%c0_16, %c128] : memref<2x512xf32, #tpu.memory_space<vmem>>, vector<2x128xf32>
    %30 = vector.extract_strided_slice %0 {offsets = [0, 0], sizes = [32, 1], strides = [1, 1]} : vector<32x2xf32> to vector<32x1xf32>
    %31 = vector.extract_strided_slice %29 {offsets = [0, 0], sizes = [1, 128], strides = [1, 1]} : vector<2x128xf32> to vector<1x128xf32>
    %32 = vector.broadcast %30 : vector<32x1xf32> to vector<32x128xf32>
    %33 = vector.broadcast %31 : vector<1x128xf32> to vector<32x128xf32>
    %34 = arith.mulf %32, %33 : vector<32x128xf32>
    %35 = vector.broadcast %1 : vector<32x1xf32> to vector<32x128xf32>
    %36 = arith.addf %35, %34 : vector<32x128xf32>
    %37 = vector.extract_strided_slice %0 {offsets = [0, 1], sizes = [32, 1], strides = [1, 1]} : vector<32x2xf32> to vector<32x1xf32>
    %38 = vector.extract_strided_slice %29 {offsets = [1, 0], sizes = [1, 128], strides = [1, 1]} : vector<2x128xf32> to vector<1x128xf32>
    %39 = vector.broadcast %37 : vector<32x1xf32> to vector<32x128xf32>
    %40 = vector.broadcast %38 : vector<1x128xf32> to vector<32x128xf32>
    %41 = arith.mulf %39, %40 : vector<32x128xf32>
    %42 = arith.addf %36, %41 : vector<32x128xf32>
    %43 = math.tanh %42 : vector<32x128xf32>
    %cst_17 = arith.constant dense<0.000000e+00> : vector<32x128xf32>
    %44 = tpu.matmul %2, %43, %cst_17 {dimension_numbers = #tpu.dot_dimension_numbers<[1], [0], [0], [1], [0, 0, 1, 1], [], []>} : vector<32x32xf32>, vector<32x128xf32>, vector<32x128xf32> -> vector<32x128xf32>
    %45 = vector.broadcast %3 : vector<32x1xf32> to vector<32x128xf32>
    %46 = arith.addf %44, %45 : vector<32x128xf32>
    %47 = math.tanh %46 : vector<32x128xf32>
    %cst_18 = arith.constant dense<0.000000e+00> : vector<1x128xf32>
    %48 = tpu.matmul %4, %47, %cst_18 {dimension_numbers = #tpu.dot_dimension_numbers<[1], [0], [0], [1], [0, 0, 1, 1], [], []>} : vector<1x32xf32>, vector<32x128xf32>, vector<1x128xf32> -> vector<1x128xf32>
    %49 = vector.broadcast %5 : vector<1x1xf32> to vector<1x128xf32>
    %50 = arith.addf %48, %49 : vector<1x128xf32>
    %c0_19 = arith.constant 0 : index
    %c128_20 = arith.constant 128 : index
    %51 = vector.load %arg8[%c0_19, %c128_20] : memref<1x512xf32, #tpu.memory_space<vmem>>, vector<1x128xf32>
    tpu.vector_store %arg8[%c0_19, %c128_20], %50 {strides = array<i32>} : memref<1x512xf32, #tpu.memory_space<vmem>>, vector<1x128xf32>,
    %c0_21 = arith.constant 0 : index
    %c256 = arith.constant 256 : index
    %52 = vector.load %arg1[%c0_21, %c256] : memref<2x512xf32, #tpu.memory_space<vmem>>, vector<2x128xf32>
    %53 = vector.extract_strided_slice %0 {offsets = [0, 0], sizes = [32, 1], strides = [1, 1]} : vector<32x2xf32> to vector<32x1xf32>
    %54 = vector.extract_strided_slice %52 {offsets = [0, 0], sizes = [1, 128], strides = [1, 1]} : vector<2x128xf32> to vector<1x128xf32>
    %55 = vector.broadcast %53 : vector<32x1xf32> to vector<32x128xf32>
    %56 = vector.broadcast %54 : vector<1x128xf32> to vector<32x128xf32>
    %57 = arith.mulf %55, %56 : vector<32x128xf32>
    %58 = vector.broadcast %1 : vector<32x1xf32> to vector<32x128xf32>
    %59 = arith.addf %58, %57 : vector<32x128xf32>
    %60 = vector.extract_strided_slice %0 {offsets = [0, 1], sizes = [32, 1], strides = [1, 1]} : vector<32x2xf32> to vector<32x1xf32>
    %61 = vector.extract_strided_slice %52 {offsets = [1, 0], sizes = [1, 128], strides = [1, 1]} : vector<2x128xf32> to vector<1x128xf32>
    %62 = vector.broadcast %60 : vector<32x1xf32> to vector<32x128xf32>
    %63 = vector.broadcast %61 : vector<1x128xf32> to vector<32x128xf32>
    %64 = arith.mulf %62, %63 : vector<32x128xf32>
    %65 = arith.addf %59, %64 : vector<32x128xf32>
    %66 = math.tanh %65 : vector<32x128xf32>
    %cst_22 = arith.constant dense<0.000000e+00> : vector<32x128xf32>
    %67 = tpu.matmul %2, %66, %cst_22 {dimension_numbers = #tpu.dot_dimension_numbers<[1], [0], [0], [1], [0, 0, 1, 1], [], []>} : vector<32x32xf32>, vector<32x128xf32>, vector<32x128xf32> -> vector<32x128xf32>
    %68 = vector.broadcast %3 : vector<32x1xf32> to vector<32x128xf32>
    %69 = arith.addf %67, %68 : vector<32x128xf32>
    %70 = math.tanh %69 : vector<32x128xf32>
    %cst_23 = arith.constant dense<0.000000e+00> : vector<1x128xf32>
    %71 = tpu.matmul %4, %70, %cst_23 {dimension_numbers = #tpu.dot_dimension_numbers<[1], [0], [0], [1], [0, 0, 1, 1], [], []>} : vector<1x32xf32>, vector<32x128xf32>, vector<1x128xf32> -> vector<1x128xf32>
    %72 = vector.broadcast %5 : vector<1x1xf32> to vector<1x128xf32>
    %73 = arith.addf %71, %72 : vector<1x128xf32>
    %c0_24 = arith.constant 0 : index
    %c256_25 = arith.constant 256 : index
    %74 = vector.load %arg8[%c0_24, %c256_25] : memref<1x512xf32, #tpu.memory_space<vmem>>, vector<1x128xf32>
    tpu.vector_store %arg8[%c0_24, %c256_25], %73 {strides = array<i32>} : memref<1x512xf32, #tpu.memory_space<vmem>>, vector<1x128xf32>,
    %c0_26 = arith.constant 0 : index
    %c384 = arith.constant 384 : index
    %75 = vector.load %arg1[%c0_26, %c384] : memref<2x512xf32, #tpu.memory_space<vmem>>, vector<2x128xf32>
    %76 = vector.extract_strided_slice %0 {offsets = [0, 0], sizes = [32, 1], strides = [1, 1]} : vector<32x2xf32> to vector<32x1xf32>
    %77 = vector.extract_strided_slice %75 {offsets = [0, 0], sizes = [1, 128], strides = [1, 1]} : vector<2x128xf32> to vector<1x128xf32>
    %78 = vector.broadcast %76 : vector<32x1xf32> to vector<32x128xf32>
    %79 = vector.broadcast %77 : vector<1x128xf32> to vector<32x128xf32>
    %80 = arith.mulf %78, %79 : vector<32x128xf32>
    %81 = vector.broadcast %1 : vector<32x1xf32> to vector<32x128xf32>
    %82 = arith.addf %81, %80 : vector<32x128xf32>
    %83 = vector.extract_strided_slice %0 {offsets = [0, 1], sizes = [32, 1], strides = [1, 1]} : vector<32x2xf32> to vector<32x1xf32>
    %84 = vector.extract_strided_slice %75 {offsets = [1, 0], sizes = [1, 128], strides = [1, 1]} : vector<2x128xf32> to vector<1x128xf32>
    %85 = vector.broadcast %83 : vector<32x1xf32> to vector<32x128xf32>
    %86 = vector.broadcast %84 : vector<1x128xf32> to vector<32x128xf32>
    %87 = arith.mulf %85, %86 : vector<32x128xf32>
    %88 = arith.addf %82, %87 : vector<32x128xf32>
    %89 = math.tanh %88 : vector<32x128xf32>
    %cst_27 = arith.constant dense<0.000000e+00> : vector<32x128xf32>
    %90 = tpu.matmul %2, %89, %cst_27 {dimension_numbers = #tpu.dot_dimension_numbers<[1], [0], [0], [1], [0, 0, 1, 1], [], []>} : vector<32x32xf32>, vector<32x128xf32>, vector<32x128xf32> -> vector<32x128xf32>
    %91 = vector.broadcast %3 : vector<32x1xf32> to vector<32x128xf32>
    %92 = arith.addf %90, %91 : vector<32x128xf32>
    %93 = math.tanh %92 : vector<32x128xf32>
    %cst_28 = arith.constant dense<0.000000e+00> : vector<1x128xf32>
    %94 = tpu.matmul %4, %93, %cst_28 {dimension_numbers = #tpu.dot_dimension_numbers<[1], [0], [0], [1], [0, 0, 1, 1], [], []>} : vector<1x32xf32>, vector<32x128xf32>, vector<1x128xf32> -> vector<1x128xf32>
    %95 = vector.broadcast %5 : vector<1x1xf32> to vector<1x128xf32>
    %96 = arith.addf %94, %95 : vector<1x128xf32>
    %c0_29 = arith.constant 0 : index
    %c384_30 = arith.constant 384 : index
    %97 = vector.load %arg8[%c0_29, %c384_30] : memref<1x512xf32, #tpu.memory_space<vmem>>, vector<1x128xf32>
    tpu.vector_store %arg8[%c0_29, %c384_30], %96 {strides = array<i32>} : memref<1x512xf32, #tpu.memory_space<vmem>>, vector<1x128xf32>,
    return
  }
  func.func @transform_0(%arg0: i32) -> (i32, i32) {
    %c0_i32 = arith.constant 0 : i32
    %c0_i32_0 = arith.constant 0 : i32
    return %c0_i32, %arg0 : i32, i32
  }
  func.func @transform_1(%arg0: i32) -> (i32, i32) {
    %c0_i32 = arith.constant 0 : i32
    %c0_i32_0 = arith.constant 0 : i32
    %c0_i32_1 = arith.constant 0 : i32
    return %c0_i32, %c0_i32_0 : i32, i32
  }
  func.func @transform_2(%arg0: i32) -> (i32, i32) {
    %c0_i32 = arith.constant 0 : i32
    %c0_i32_0 = arith.constant 0 : i32
    %c0_i32_1 = arith.constant 0 : i32
    return %c0_i32, %c0_i32_0 : i32, i32
  }
  func.func @transform_3(%arg0: i32) -> (i32, i32) {
    %c0_i32 = arith.constant 0 : i32
    %c0_i32_0 = arith.constant 0 : i32
    %c0_i32_1 = arith.constant 0 : i32
    return %c0_i32, %c0_i32_0 : i32, i32
  }
  func.func @transform_4(%arg0: i32) -> (i32, i32) {
    %c0_i32 = arith.constant 0 : i32
    %c0_i32_0 = arith.constant 0 : i32
    %c0_i32_1 = arith.constant 0 : i32
    return %c0_i32, %c0_i32_0 : i32, i32
  }
  func.func @transform_5(%arg0: i32) -> (i32, i32) {
    %c0_i32 = arith.constant 0 : i32
    %c0_i32_0 = arith.constant 0 : i32
    %c0_i32_1 = arith.constant 0 : i32
    return %c0_i32, %c0_i32_0 : i32, i32
  }
  func.func @transform_6(%arg0: i32) -> (i32, i32) {
    %c0_i32 = arith.constant 0 : i32
    %c0_i32_0 = arith.constant 0 : i32
    %c0_i32_1 = arith.constant 0 : i32
    return %c0_i32, %c0_i32_0 : i32, i32
  }
  func.func @transform_7(%arg0: i32) -> (i32, i32) {
    %c0_i32 = arith.constant 0 : i32
    %c0_i32_0 = arith.constant 0 : i32
    return %c0_i32, %arg0 : i32, i32
  }
}

</mosaic_0001>

<llo_original>
// kernel: net1d_forward_xt.1
$region0: #{net1d_forward_xt.1}
  #allocation0 [shape = 'u32[]', space=smem, size = 0x4, offset = 0x4, fixed_abs, tag = 'smem constant byte address 0x4 - core index']
  #allocation1 [shape = 'u32[144,128]{1,0:T(1,128)}', space=vmem, size = 0x12000, scoped, tag = 'internal scratch']
  #allocation2 [shape = 'f32[1,1]{1,0:T(1,128)S(1)}', space=vmem, size = 0x200, scoped, tag = 'scoped memory for net1d_forward_xt.1']
  %s0 = inlined_call_operand.vmem [shape: f32[2,1000], index: 0, kind: input, shape index: {}]
  %s1 = inlined_call_operand.vmem [shape: f32[32,2], index: 1, kind: input, shape index: {}]
  %s2 = inlined_call_operand.vmem [shape: f32[32,1], index: 2, kind: input, shape index: {}]
  %s3 = inlined_call_operand.vmem [shape: f32[32,32], index: 3, kind: input, shape index: {}]
  %s4 = inlined_call_operand.vmem [shape: f32[32,1], index: 4, kind: input, shape index: {}]
  %s5 = inlined_call_operand.vmem [shape: f32[1,32], index: 5, kind: input, shape index: {}]
  %s6 = inlined_call_operand.<no memory space> [shape: f32[1,1], index: 6, kind: input, shape index: {}]
  %s7 = inlined_call_operand.hbm [shape: f32[1,1000], index: 7, kind: output, shape index: {}]
  %s8 = sld [smem:[#allocation0]]
  $region61: #{net1d_forward_xt.1} parent=0
    _
  %s10 = ssub.s32 1, %s8
  %s11 = scalar_select 0, %s10, %s8
  %v12 = vstv %s6
  %13 = vst [vmem:[#allocation2] sm:$0x1] %v12
  $region1: #{net1d_forward_xt.1} parent=0
    #allocation3 [shape = 'u8[4096]{0}', space=vmem, size = 0x1000, scoped, tag = 'output window, operand 0']
    #allocation4 [shape = 's32[2]{0}', space=sflag, size = 0x8, scoped, tag = 'scoped memory for net1d_forward_xt.1']
    %14 = vsyncpa [#allocation4], 0
    %s15 = scalar_lea.sflag [#allocation4], 1
    %16 = vsyncpa %s15, 0
    loop: start=0, step=1, limit=4
    $region2: #{net1d_forward_xt.1} parent=1 // loop_pre_header
      _
    $region3: #{net1d_forward_xt.1} parent=1 // loop_header
      %s18 = sphi 0, %s22
      %p19 = scmp.ge.s32.totalorder %s18, 4
      %s28 = sphi 0, %s30
      %s31 = sphi 0, %s28
      %s32 = sphi 0, %s31
      %s48 = sphi 0, %s32
      %s52 = sphi 0, %s52
      %s54 = sphi 0, %s52
      %s55 = sphi 0, %s54
      %s69 = sphi 0, %s55
      %s73 = sphi 0, %s73
      %s75 = sphi 0, %s73
      %s76 = sphi 0, %s75
      %s90 = sphi 0, %s76
      %s94 = sphi 0, %s94
      %s96 = sphi 0, %s94
      %s97 = sphi 0, %s96
      %s111 = sphi 0, %s97
      %s115 = sphi 0, %s115
      %s117 = sphi 0, %s115
      %s118 = sphi 0, %s117
      %s132 = sphi 0, %s118
      %s136 = sphi 0, %s136
      %s138 = sphi 0, %s136
      %s139 = sphi 0, %s138
      %s153 = sphi 0, %s139
      %s157 = sphi 0, %s157
      %s159 = sphi 0, %s157
      %s160 = sphi 0, %s159
      %s174 = sphi 0, %s160
      %s180 = sphi 0, %s182
      %s183 = sphi 0, %s180
      %s184 = sphi 0, %s183
      %s200 = sphi 0, %s184
    $region4: #{net1d_forward_xt.1} parent=1 // loop_header_branch
      %21 = sbr.rel (%p19) target = $region8
    $region5: #{net1d_forward_xt.1} parent=1 // loop_body
      %s23 = ssub.s32 %s18, 1
      %s24 = ssub.s32 %s18, 2
      %s25 = sadd.s32 %s18, 1
      %s26 = ssub.s32 %s18, %s25
      %p27 = scmp.eq.s32.totalorder %s26, 0
      %s29 = sadd.s32 %s28, 1
      %s30 = scalar_select %p27, %s28, %s29
      %p33 = pneg %p27
      %p34 = scmp.eq.s32.totalorder %s18, 1
      %p35 = por %p33, %p34
      %p36 = scmp.ne.s32.totalorder %s28, %s31
      %p37 = scmp.eq.s32.totalorder %s18, 0
      %p38 = por %p36, %p37
      %p39 = scmp.ne.s32.totalorder %s28, %s31
      %p40 = scmp.eq.s32.totalorder %s23, 1
      %p41 = por %p39, %p40
      %p42 = scmp.ne.s32.totalorder %s31, %s32
      %p43 = scmp.eq.s32.totalorder %s23, 0
      %p44 = por %p42, %p43
      %p45 = scmp.ne.s32.totalorder %s31, %s32
      %p46 = scmp.eq.s32.totalorder %s24, 1
      %p47 = por %p45, %p46
      %p49 = scmp.ne.s32.totalorder %s32, %s48
      %p50 = scmp.eq.s32.totalorder %s24, 0
      %p51 = por %p49, %p50
      %s53 = sadd.s32 %s52, 1
      %p56 = scmp.eq.s32.totalorder %s18, 1
      %p57 = scmp.ne.s32.totalorder %s52, %s54
      %p58 = scmp.eq.s32.totalorder %s18, 0
      %p59 = por %p57, %p58
      %p60 = scmp.ne.s32.totalorder %s52, %s54
      %p61 = scmp.eq.s32.totalorder %s23, 1
      %p62 = por %p60, %p61
      %p63 = scmp.ne.s32.totalorder %s54, %s55
      %p64 = scmp.eq.s32.totalorder %s23, 0
      %p65 = por %p63, %p64
      %p66 = scmp.ne.s32.totalorder %s54, %s55
      %p67 = scmp.eq.s32.totalorder %s24, 1
      %p68 = por %p66, %p67
      %p70 = scmp.ne.s32.totalorder %s55, %s69
      %p71 = scmp.eq.s32.totalorder %s24, 0
      %p72 = por %p70, %p71
      %s74 = sadd.s32 %s73, 1
      %p77 = scmp.eq.s32.totalorder %s18, 1
      %p78 = scmp.ne.s32.totalorder %s73, %s75
      %p79 = scmp.eq.s32.totalorder %s18, 0
      %p80 = por %p78, %p79
      %p81 = scmp.ne.s32.totalorder %s73, %s75
      %p82 = scmp.eq.s32.totalorder %s23, 1
      %p83 = por %p81, %p82
      %p84 = scmp.ne.s32.totalorder %s75, %s76
      %p85 = scmp.eq.s32.totalorder %s23, 0
      %p86 = por %p84, %p85
      %p87 = scmp.ne.s32.totalorder %s75, %s76
      %p88 = scmp.eq.s32.totalorder %s24, 1
      %p89 = por %p87, %p88
      %p91 = scmp.ne.s32.totalorder %s76, %s90
      %p92 = scmp.eq.s32.totalorder %s24, 0
      %p93 = por %p91, %p92
      %s95 = sadd.s32 %s94, 1
      %p98 = scmp.eq.s32.totalorder %s18, 1
      %p99 = scmp.ne.s32.totalorder %s94, %s96
      %p100 = scmp.eq.s32.totalorder %s18, 0
      %p101 = por %p99, %p100
      %p102 = scmp.ne.s32.totalorder %s94, %s96
      %p103 = scmp.eq.s32.totalorder %s23, 1
      %p104 = por %p102, %p103
      %p105 = scmp.ne.s32.totalorder %s96, %s97
      %p106 = scmp.eq.s32.totalorder %s23, 0
      %p107 = por %p105, %p106
      %p108 = scmp.ne.s32.totalorder %s96, %s97
      %p109 = scmp.eq.s32.totalorder %s24, 1
      %p110 = por %p108, %p109
      %p112 = scmp.ne.s32.totalorder %s97, %s111
      %p113 = scmp.eq.s32.totalorder %s24, 0
      %p114 = por %p112, %p113
      %s116 = sadd.s32 %s115, 1
      %p119 = scmp.eq.s32.totalorder %s18, 1
      %p120 = scmp.ne.s32.totalorder %s115, %s117
      %p121 = scmp.eq.s32.totalorder %s18, 0
      %p122 = por %p120, %p121
      %p123 = scmp.ne.s32.totalorder %s115, %s117
      %p124 = scmp.eq.s32.totalorder %s23, 1
      %p125 = por %p123, %p124
      %p126 = scmp.ne.s32.totalorder %s117, %s118
      %p127 = scmp.eq.s32.totalorder %s23, 0
      %p128 = por %p126, %p127
      %p129 = scmp.ne.s32.totalorder %s117, %s118
      %p130 = scmp.eq.s32.totalorder %s24, 1
      %p131 = por %p129, %p130
      %p133 = scmp.ne.s32.totalorder %s118, %s132
      %p134 = scmp.eq.s32.totalorder %s24, 0
      %p135 = por %p133, %p134
      %s137 = sadd.s32 %s136, 1
      %p140 = scmp.eq.s32.totalorder %s18, 1
      %p141 = scmp.ne.s32.totalorder %s136, %s138
      %p142 = scmp.eq.s32.totalorder %s18, 0
      %p143 = por %p141, %p142
      %p144 = scmp.ne.s32.totalorder %s136, %s138
      %p145 = scmp.eq.s32.totalorder %s23, 1
      %p146 = por %p144, %p145
      %p147 = scmp.ne.s32.totalorder %s138, %s139
      %p148 = scmp.eq.s32.totalorder %s23, 0
      %p149 = por %p147, %p148
      %p150 = scmp.ne.s32.totalorder %s138, %s139
      %p151 = scmp.eq.s32.totalorder %s24, 1
      %p152 = por %p150, %p151
      %p154 = scmp.ne.s32.totalorder %s139, %s153
      %p155 = scmp.eq.s32.totalorder %s24, 0
      %p156 = por %p154, %p155
      %s158 = sadd.s32 %s157, 1
      %p161 = scmp.eq.s32.totalorder %s18, 1
      %p162 = scmp.ne.s32.totalorder %s157, %s159
      %p163 = scmp.eq.s32.totalorder %s18, 0
      %p164 = por %p162, %p163
      %p165 = scmp.ne.s32.totalorder %s157, %s159
      %p166 = scmp.eq.s32.totalorder %s23, 1
      %p167 = por %p165, %p166
      %p168 = scmp.ne.s32.totalorder %s159, %s160
      %p169 = scmp.eq.s32.totalorder %s23, 0
      %p170 = por %p168, %p169
      %p171 = scmp.ne.s32.totalorder %s159, %s160
      %p172 = scmp.eq.s32.totalorder %s24, 1
      %p173 = por %p171, %p172
      %p175 = scmp.ne.s32.totalorder %s160, %s174
      %p176 = scmp.eq.s32.totalorder %s24, 0
      %p177 = por %p175, %p176
      %s178 = ssub.s32 %s18, %s25
      %p179 = scmp.eq.s32.totalorder %s178, 0
      %s181 = sadd.s32 %s180, 1
      %s182 = scalar_select %p179, %s180, %s181
      %p185 = pneg %p179
      %p186 = scmp.eq.s32.totalorder %s18, 1
      %p187 = por %p185, %p186
      %p188 = scmp.ne.s32.totalorder %s180, %s183
      %p189 = scmp.eq.s32.totalorder %s18, 0
      %p190 = por %p188, %p189
      %p191 = scmp.ne.s32.totalorder %s180, %s183
      %p192 = scmp.eq.s32.totalorder %s23, 1
      %p193 = por %p191, %p192
      %p194 = scmp.ne.s32.totalorder %s183, %s184
      %p195 = scmp.eq.s32.totalorder %s23, 0
      %p196 = por %p194, %p195
      %p197 = scmp.ne.s32.totalorder %s183, %s184
      %p198 = scmp.eq.s32.totalorder %s24, 1
      %p199 = por %p197, %p198
      %p201 = scmp.ne.s32.totalorder %s184, %s200
      %p202 = scmp.eq.s32.totalorder %s24, 0
      %p203 = por %p201, %p202
      %p204 = scmp.le.s32.totalorder 1, %s18
      %p205 = scmp.lt.s32.totalorder %s18, 3
      %p206 = pnand %p204, %p205
      %p207 = pneg %p206
      // Predicated region
      $region9: #{net1d_forward_xt.1} parent=5 // pred_check
        _
      $region10: #{net1d_forward_xt.1} parent=5 // pred_check_branch
        %209 = sbr.rel (%p206) target = $region12
      $region11: #{net1d_forward_xt.1} parent=5 // pred_region
        %s210 = ssub.s32 %s18, 1
        // Predicated region
        $region13: #{net1d_forward_xt.1} parent=11 // pred_check
          %p211 = pneg %p65
        $region14: #{net1d_forward_xt.1} parent=11 // pred_check_branch
          %213 = sbr.rel (%p211) target = $region16
        $region15: #{net1d_forward_xt.1} parent=11 // pred_region
          _
        $region16: #{net1d_forward_xt.1} parent=11 // pred_fallthru
          _
        // Predicated region
        $region17: #{net1d_forward_xt.1} parent=11 // pred_check
          %p214 = pneg %p86
        $region18: #{net1d_forward_xt.1} parent=11 // pred_check_branch
          %216 = sbr.rel (%p214) target = $region20
        $region19: #{net1d_forward_xt.1} parent=11 // pred_region
          _
        $region20: #{net1d_forward_xt.1} parent=11 // pred_fallthru
          _
        // Predicated region
        $region21: #{net1d_forward_xt.1} parent=11 // pred_check
          %p217 = pneg %p107
        $region22: #{net1d_forward_xt.1} parent=11 // pred_check_branch
          %219 = sbr.rel (%p217) target = $region24
        $region23: #{net1d_forward_xt.1} parent=11 // pred_region
          _
        $region24: #{net1d_forward_xt.1} parent=11 // pred_fallthru
          _
        // Predicated region
        $region25: #{net1d_forward_xt.1} parent=11 // pred_check
          %p220 = pneg %p128
        $region26: #{net1d_forward_xt.1} parent=11 // pred_check_branch
          %222 = sbr.rel (%p220) target = $region28
        $region27: #{net1d_forward_xt.1} parent=11 // pred_region
          _
        $region28: #{net1d_forward_xt.1} parent=11 // pred_fallthru
          _
        // Predicated region
        $region29: #{net1d_forward_xt.1} parent=11 // pred_check
          %p223 = pneg %p149
        $region30: #{net1d_forward_xt.1} parent=11 // pred_check_branch
          %225 = sbr.rel (%p223) target = $region32
        $region31: #{net1d_forward_xt.1} parent=11 // pred_region
          _
        $region32: #{net1d_forward_xt.1} parent=11 // pred_fallthru
          _
        // Predicated region
        $region33: #{net1d_forward_xt.1} parent=11 // pred_check
          %p226 = pneg %p170
        $region34: #{net1d_forward_xt.1} parent=11 // pred_check_branch
          %228 = sbr.rel (%p226) target = $region36
        $region35: #{net1d_forward_xt.1} parent=11 // pred_region
          _
        $region36: #{net1d_forward_xt.1} parent=11 // pred_fallthru
          _
      $region12: #{net1d_forward_xt.1} parent=5 // pred_fallthru
        _
      %p229 = scmp.lt.s32.totalorder %s18, 2
      // Predicated region
      $region37: #{net1d_forward_xt.1} parent=5 // pred_check
        %p230 = pneg %p229
      $region38: #{net1d_forward_xt.1} parent=5 // pred_check_branch
        %232 = sbr.rel (%p230) target = $region40
      $region39: #{net1d_forward_xt.1} parent=5 // pred_region
        // Predicated region
        $region41: #{net1d_forward_xt.1} parent=39 // pred_check
          %p233 = pneg %p38
        $region42: #{net1d_forward_xt.1} parent=39 // pred_check_branch
          %235 = sbr.rel (%p233) target = $region44
        $region43: #{net1d_forward_xt.1} parent=39 // pred_region
          %s236 = smul.u32 4, %s18
          %p237 = scmp.lt.s32.totalorder %s236, 7
          %s238 = scalar_select %p237, %s236, 7
          %s239 = smul.addr %s238, 2
          %s240 = scalar_lea.vmem %s0, %s239
          %s241 = smul.u32 4, %s18
        $region44: #{net1d_forward_xt.1} parent=39 // pred_fallthru
          _
      $region40: #{net1d_forward_xt.1} parent=5 // pred_fallthru
        _
      %p242 = scmp.le.s32.totalorder 1, %s18
      %p243 = scmp.lt.s32.totalorder %s18, 3
      %p244 = pnand %p242, %p243
      %p245 = pneg %p244
      // Predicated region
      $region45: #{net1d_forward_xt.1} parent=5 // pred_check
        _
      $region46: #{net1d_forward_xt.1} parent=5 // pred_check_branch
        %247 = sbr.rel (%p244) target = $region48
      $region47: #{net1d_forward_xt.1} parent=5 // pred_region
        %s248 = ssub.s32 %s18, 1
        %s249 = smul.u32 4, %s23
        %p250 = scmp.lt.s32.totalorder %s249, 7
        %s251 = scalar_select %p250, %s249, 7
        %s252 = smul.addr %s251, 2
        %s253 = scalar_lea.vmem %s0, %s252
        %p254 = pneg %p44
        %p255 = pneg %p41
        %p256 = pneg %p65
        %p257 = pneg %p62
        %p258 = pneg %p86
        %p259 = pneg %p83
        %p260 = pneg %p107
        %p261 = pneg %p104
        %p262 = pneg %p128
        %p263 = pneg %p125
        %p264 = pneg %p149
        %p265 = pneg %p146
        %p266 = pneg %p170
        %p267 = pneg %p167
        %p268 = pneg %p196
        %p269 = pneg %p193
        %s270 = sand.u32 %s183, 1
        %s271 = scalar_lea.sflag [#allocation4], %s270
        %s272 = sand.u32 %s183, 1
        %s273 = smul.addr %s272, 4
        %s274 = scalar_lea.vmem [#allocation3], %s273
        %s275 = smul.u32 4, %s23
        %p276 = scmp.lt.s32.totalorder %s275, 7
        %s277 = scalar_select %p276, %s275, 7
        %s278 = smul.addr %s277, 2
        %s279 = scalar_lea.vmem %s0, %s278
        %s280 = smul.u32 4, %s23
        %s281 = smul.u32 4, %s23
        %v282 = vld [vmem:[%s1] sm:$0xff]
        %v283 = vld [vmem:[%s1 + $0x8] sm:$0xff]
        %v284 = vld [vmem:[%s1 + $0x10] sm:$0xff]
        %v285 = vld [vmem:[%s1 + $0x18] sm:$0xff]
        %v286 = vld [vmem:[%s2] sm:$0xff]
        %v287 = vld [vmem:[%s2 + $0x8] sm:$0xff]
        %v288 = vld [vmem:[%s2 + $0x10] sm:$0xff]
        %v289 = vld [vmem:[%s2 + $0x18] sm:$0xff]
        %v290 = vld [vmem:[%s3] sm:$0xff]
        %v291 = vld [vmem:[%s3 + $0x8] sm:$0xff]
        %v292 = vld [vmem:[%s3 + $0x10] sm:$0xff]
        %v293 = vld [vmem:[%s3 + $0x18] sm:$0xff]
        %v294 = vld [vmem:[%s4] sm:$0xff]
        %v295 = vld [vmem:[%s4 + $0x8] sm:$0xff]
        %v296 = vld [vmem:[%s4 + $0x10] sm:$0xff]
        %v297 = vld [vmem:[%s4 + $0x18] sm:$0xff]
        %v298 = vld [vmem:[%s5] sm:$0x1]
        %v299 = vld [vmem:[#allocation2] sm:$0x1]
        %v300 = vld [vmem:[%s279] sm:$0x3]
        %302 = vset.pattern.permute.xlu0 0
        %303 = vperm.xlu0 %302, %v282
        %v304 = vpop.permute.xlu0 %303
        %307 = vset.pattern.permute.xlu0 0
        %308 = vperm.xlu0 %307, %v283
        %v309 = vpop.permute.xlu0 %308
        %312 = vset.pattern.permute.xlu0 0
        %313 = vperm.xlu0 %312, %v284
        %v314 = vpop.permute.xlu0 %313
        %317 = vset.pattern.permute.xlu0 0
        %318 = vperm.xlu0 %317, %v285
        %v319 = vpop.permute.xlu0 %318
        %v321 = vlaneseq
        %v322 = vshrl.u32 %v321, 7
        %v323 = vsub.s32 0, %v322
        %v324 = vrot.slane %v300, %v323
        %v325 = vmul.f32 %v304, %v324
        %v326 = vmul.f32 %v309, %v324
        %v327 = vmul.f32 %v314, %v324
        %v328 = vmul.f32 %v319, %v324
        %330 = vset.pattern.permute.xlu0 0
        %331 = vperm.xlu0 %330, %v286
        %v332 = vpop.permute.xlu0 %331
        %335 = vset.pattern.permute.xlu0 0
        %336 = vperm.xlu0 %335, %v287
        %v337 = vpop.permute.xlu0 %336
        %340 = vset.pattern.permute.xlu0 0
        %341 = vperm.xlu0 %340, %v288
        %v342 = vpop.permute.xlu0 %341
        %345 = vset.pattern.permute.xlu0 0
        %346 = vperm.xlu0 %345, %v289
        %v347 = vpop.permute.xlu0 %346
        %v349 = vadd.f32 %v332, %v325
        %v350 = vadd.f32 %v337, %v326
        %v351 = vadd.f32 %v342, %v327
        %v352 = vadd.f32 %v347, %v328
        %353 = vset.pattern.permute.xlu0 1
        %354 = vperm.xlu0 %353, %v282
        %v355 = vpop.permute.xlu0 %354
        %357 = vset.pattern.permute.xlu0 1
        %358 = vperm.xlu0 %357, %v283
        %v359 = vpop.permute.xlu0 %358
        %361 = vset.pattern.permute.xlu0 1
        %362 = vperm.xlu0 %361, %v284
        %v363 = vpop.permute.xlu0 %362
        %365 = vset.pattern.permute.xlu0 1
        %366 = vperm.xlu0 %365, %v285
        %v367 = vpop.permute.xlu0 %366
        %v369 = vlaneseq
        %v370 = vshrl.u32 %v369, 7
        %v371 = vsub.s32 1, %v370
        %v372 = vrot.slane %v300, %v371
        %v373 = vmul.f32 %v355, %v372
        %v374 = vmul.f32 %v359, %v372
        %v375 = vmul.f32 %v363, %v372
        %v376 = vmul.f32 %v367, %v372
        %v377 = vadd.f32 %v349, %v373
        %v378 = vadd.f32 %v350, %v374
        %v379 = vadd.f32 %v351, %v375
        %v380 = vadd.f32 %v352, %v376
        %v381 = vtanh.pop %v377
        %v382 = vtanh.pop %v378
        %v383 = vtanh.pop %v379
        %v384 = vtanh.pop %v380
        %386 = vset.pattern.permute.xlu0 0
        %387 = vperm.xlu0 %386, %v294
        %v388 = vpop.permute.xlu0 %387
        %391 = vset.pattern.permute.xlu0 0
        %392 = vperm.xlu0 %391, %v295
        %v393 = vpop.permute.xlu0 %392
        %396 = vset.pattern.permute.xlu0 0
        %397 = vperm.xlu0 %396, %v296
        %v398 = vpop.permute.xlu0 %397
        %401 = vset.pattern.permute.xlu0 0
        %402 = vperm.xlu0 %401, %v297
        %v403 = vpop.permute.xlu0 %402
        %vm405 = vcmask 261120
        %v407 = vsel %vm405, %v290, 0
        %v410 = vsel %vm405, %v291, 0
        %v413 = vsel %vm405, %v292, 0
        %v416 = vsel %vm405, %v293, 0
        %418 = vmatprep.subr.mxu0 0.0
        %419 = vmatpush1.msra.mxu0 %v381
        %420 = vmatprep.subr.mxu0 0.0
        %421 = vmatpush1.msra.mxu0 %v382
        %422 = vmatprep.subr.mxu0 0.0
        %423 = vmatpush1.msra.mxu0 %v383
        %424 = vmatprep.subr.mxu0 0.0
        %425 = vmatpush1.msra.mxu0 %v384
        %426 = vmatprep.subr.mxu0 0.0
        %427 = vmatpush1.msra.mxu0 0.0
        %428 = vmatprep.subr.mxu0 0.0
        %429 = vmatpush1.msra.mxu0 0.0
        %430 = vmatprep.subr.mxu0 0.0
        %431 = vmatpush1.msra.mxu0 0.0
        %432 = vmatprep.subr.mxu0 0.0
        %433 = vmatpush1.msra.mxu0 0.0
        %434 = vmatprep.subr.mxu0 0.0
        %435 = vmatpush1.msra.mxu0 0.0
        %436 = vmatprep.subr.mxu0 0.0
        %437 = vmatpush1.msra.mxu0 0.0
        %438 = vmatprep.subr.mxu0 0.0
        %439 = vmatpush1.msra.mxu0 0.0
        %440 = vmatprep.subr.mxu0 0.0
        %441 = vmatpush1.msra.mxu0 0.0
        %442 = vmatprep.subr.mxu0 0.0
        %443 = vmatpush1.msra.mxu0 0.0
        %444 = vmatprep.subr.mxu0 0.0
        %445 = vmatpush1.msra.mxu0 0.0
        %446 = vmatprep.subr.mxu0 0.0
        %447 = vmatpush1.msra.mxu0 0.0
        %448 = vmatprep.subr.mxu0 0.0
        %449 = vmatpush1.msra.mxu0 0.0
        %450 = vmatprep.subr.mxu0 0.0
        %451 = vmatpush1.msra.mxu0 0.0
        %452 = vmatprep.subr.mxu0 0.0
        %453 = vmatpush1.msra.mxu0 0.0
        %454 = vmatprep.subr.mxu0 0.0
        %455 = vmatpush1.msra.mxu0 0.0
        %456 = vmatprep.subr.mxu0 0.0
        %457 = vmatpush1.msra.mxu0 0.0
        %458 = vmatprep.subr.mxu0 0.0
        %459 = vmatpush1.msra.mxu0 0.0
        %460 = vmatprep.subr.mxu0 0.0
        %461 = vmatpush1.msra.mxu0 0.0
        %462 = vmatprep.subr.mxu0 0.0
        %463 = vmatpush1.msra.mxu0 0.0
        %464 = vmatprep.subr.mxu0 0.0
        %465 = vmatpush1.msra.mxu0 0.0
        %466 = vmatprep.subr.mxu0 0.0
        %467 = vmatpush1.msra.mxu0 0.0
        %468 = vmatprep.subr.mxu0 0.0
        %469 = vmatpush1.msra.mxu0 0.0
        %470 = vmatprep.subr.mxu0 0.0
        %471 = vmatpush1.msra.mxu0 0.0
        %472 = vmatprep.subr.mxu0 0.0
        %473 = vmatpush1.msra.mxu0 0.0
        %474 = vmatprep.subr.mxu0 0.0
        %475 = vmatpush1.msra.mxu0 0.0
        %476 = vmatprep.subr.mxu0 0.0
        %477 = vmatpush1.msra.mxu0 0.0
        %478 = vmatprep.subr.mxu0 0.0
        %479 = vmatpush1.msra.mxu0 0.0
        %480 = vmatprep.subr.mxu0 0.0
        %481 = vmatpush1.msra.mxu0 0.0
        %482 = vmatprep.mubr.f32.mxu0 0.0
        %483 = vmatmul.mubr.f32.gmra.mrb[0].mxu0 %v407
        %v484 = vpop.f32.mrb[0].mxu0
        %v485 = vadd.f32 %v388, %v484
        %v486 = vpop.f32.mrb[0].mxu0
        %487 = vmatprep.mubr.f32.mxu0 0.0
        %488 = vmatmul.mubr.f32.gmra.mrb[0].mxu0 %v410
        %v489 = vpop.f32.mrb[0].mxu0
        %v490 = vadd.f32 %v393, %v489
        %v491 = vpop.f32.mrb[0].mxu0
        %492 = vmatprep.mubr.f32.mxu0 0.0
        %493 = vmatmul.mubr.f32.gmra.mrb[0].mxu0 %v413
        %v494 = vpop.f32.mrb[0].mxu0
        %v495 = vadd.f32 %v398, %v494
        %v496 = vpop.f32.mrb[0].mxu0
        %497 = vmatprep.mubr.f32.mxu0 0.0
        %498 = vmatmul.mubr.f32.gmra.mrb[0].mxu0 %v416
        %v499 = vpop.f32.mrb[0].mxu0
        %v500 = vadd.f32 %v403, %v499
        %v501 = vpop.f32.mrb[0].mxu0
        %502 = vdwg.mxu0
        %v503 = vtanh.pop %v485
        %v504 = vtanh.pop %v490
        %v505 = vtanh.pop %v495
        %v506 = vtanh.pop %v500
        %508 = vset.pattern.permute.xlu0 0
        %509 = vperm.xlu0 %508, %v299
        %v510 = vpop.permute.xlu0 %509
        %v512 = vlaneseq
        %v513 = vshrl.u32 %v512, 7
        %v514 = vsub.s32 0, %v513
        %v515 = vrot.slane %v510, %v514
        %v517 = vsel %vm405, %v298, 0
        %519 = vmatprep.subr.mxu0 0.0
        %520 = vmatpush1.msra.mxu0 %v503
        %521 = vmatprep.subr.mxu0 0.0
        %522 = vmatpush1.msra.mxu0 %v504
        %523 = vmatprep.subr.mxu0 0.0
        %524 = vmatpush1.msra.mxu0 %v505
        %525 = vmatprep.subr.mxu0 0.0
        %526 = vmatpush1.msra.mxu0 %v506
        %527 = vmatprep.subr.mxu0 0.0
        %528 = vmatpush1.msra.mxu0 0.0
        %529 = vmatprep.subr.mxu0 0.0
        %530 = vmatpush1.msra.mxu0 0.0
        %531 = vmatprep.subr.mxu0 0.0
        %532 = vmatpush1.msra.mxu0 0.0
        %533 = vmatprep.subr.mxu0 0.0
        %534 = vmatpush1.msra.mxu0 0.0
        %535 = vmatprep.subr.mxu0 0.0
        %536 = vmatpush1.msra.mxu0 0.0
        %537 = vmatprep.subr.mxu0 0.0
        %538 = vmatpush1.msra.mxu0 0.0
        %539 = vmatprep.subr.mxu0 0.0
        %540 = vmatpush1.msra.mxu0 0.0
        %541 = vmatprep.subr.mxu0 0.0
        %542 = vmatpush1.msra.mxu0 0.0
        %543 = vmatprep.subr.mxu0 0.0
        %544 = vmatpush1.msra.mxu0 0.0
        %545 = vmatprep.subr.mxu0 0.0
        %546 = vmatpush1.msra.mxu0 0.0
        %547 = vmatprep.subr.mxu0 0.0
        %548 = vmatpush1.msra.mxu0 0.0
        %549 = vmatprep.subr.mxu0 0.0
        %550 = vmatpush1.msra.mxu0 0.0
        %551 = vmatprep.subr.mxu0 0.0
        %552 = vmatpush1.msra.mxu0 0.0
        %553 = vmatprep.subr.mxu0 0.0
        %554 = vmatpush1.msra.mxu0 0.0
        %555 = vmatprep.subr.mxu0 0.0
        %556 = vmatpush1.msra.mxu0 0.0
        %557 = vmatprep.subr.mxu0 0.0
        %558 = vmatpush1.msra.mxu0 0.0
        %559 = vmatprep.subr.mxu0 0.0
        %560 = vmatpush1.msra.mxu0 0.0
        %561 = vmatprep.subr.mxu0 0.0
        %562 = vmatpush1.msra.mxu0 0.0
        %563 = vmatprep.subr.mxu0 0.0
        %564 = vmatpush1.msra.mxu0 0.0
        %565 = vmatprep.subr.mxu0 0.0
        %566 = vmatpush1.msra.mxu0 0.0
        %567 = vmatprep.subr.mxu0 0.0
        %568 = vmatpush1.msra.mxu0 0.0
        %569 = vmatprep.subr.mxu0 0.0
        %570 = vmatpush1.msra.mxu0 0.0
        %571 = vmatprep.subr.mxu0 0.0
        %572 = vmatpush1.msra.mxu0 0.0
        %573 = vmatprep.subr.mxu0 0.0
        %574 = vmatpush1.msra.mxu0 0.0
        %575 = vmatprep.subr.mxu0 0.0
        %576 = vmatpush1.msra.mxu0 0.0
        %577 = vmatprep.subr.mxu0 0.0
        %578 = vmatpush1.msra.mxu0 0.0
        %579 = vmatprep.subr.mxu0 0.0
        %580 = vmatpush1.msra.mxu0 0.0
        %581 = vmatprep.subr.mxu0 0.0
        %582 = vmatpush1.msra.mxu0 0.0
        %583 = vmatprep.mubr.f32.mxu0 0.0
        %584 = vmatmul.mubr.f32.gmra.mrb[0].mxu0 %v517
        %v585 = vpop.f32.mrb[0].mxu0
        %v586 = vadd.f32 %v515, %v585
        %v587 = vpop.f32.mrb[0].mxu0
        %588 = vdwg.mxu0
        %v589 = vlaneseq
        %vm590 = vcmp.ge.s32.totalorder %v589, 0
        %vm591 = vcmp.lt.s32.totalorder %v589, 128
        %vm592 = vmand %vm590, %vm591
        %593 = vst.msk [vmem:[%s274] sm:$0x1] %vm592, %v586
        %v594 = vld [vmem:[%s279 + $0x2] sm:$0x3]
        %v595 = vlaneseq
        %v596 = vshrl.u32 %v595, 7
        %v597 = vsub.s32 0, %v596
        %v598 = vrot.slane %v594, %v597
        %v599 = vmul.f32 %v304, %v598
        %v600 = vmul.f32 %v309, %v598
        %v601 = vmul.f32 %v314, %v598
        %v602 = vmul.f32 %v319, %v598
        %v603 = vadd.f32 %v332, %v599
        %v604 = vadd.f32 %v337, %v600
        %v605 = vadd.f32 %v342, %v601
        %v606 = vadd.f32 %v347, %v602
        %v607 = vlaneseq
        %v608 = vshrl.u32 %v607, 7
        %v609 = vsub.s32 1, %v608
        %v610 = vrot.slane %v594, %v609
        %v611 = vmul.f32 %v355, %v610
        %v612 = vmul.f32 %v359, %v610
        %v613 = vmul.f32 %v363, %v610
        %v614 = vmul.f32 %v367, %v610
        %v615 = vadd.f32 %v603, %v611
        %v616 = vadd.f32 %v604, %v612
        %v617 = vadd.f32 %v605, %v613
        %v618 = vadd.f32 %v606, %v614
        %v619 = vtanh.pop %v615
        %v620 = vtanh.pop %v616
        %v621 = vtanh.pop %v617
        %v622 = vtanh.pop %v618
        %623 = vmatprep.subr.mxu0 0.0
        %624 = vmatpush1.msra.mxu0 %v619
        %625 = vmatprep.subr.mxu0 0.0
        %626 = vmatpush1.msra.mxu0 %v620
        %627 = vmatprep.subr.mxu0 0.0
        %628 = vmatpush1.msra.mxu0 %v621
        %629 = vmatprep.subr.mxu0 0.0
        %630 = vmatpush1.msra.mxu0 %v622
        %631 = vmatprep.subr.mxu0 0.0
        %632 = vmatpush1.msra.mxu0 0.0
        %633 = vmatprep.subr.mxu0 0.0
        %634 = vmatpush1.msra.mxu0 0.0
        %635 = vmatprep.subr.mxu0 0.0
        %636 = vmatpush1.msra.mxu0 0.0
        %637 = vmatprep.subr.mxu0 0.0
        %638 = vmatpush1.msra.mxu0 0.0
        %639 = vmatprep.subr.mxu0 0.0
        %640 = vmatpush1.msra.mxu0 0.0
        %641 = vmatprep.subr.mxu0 0.0
        %642 = vmatpush1.msra.mxu0 0.0
        %643 = vmatprep.subr.mxu0 0.0
        %644 = vmatpush1.msra.mxu0 0.0
        %645 = vmatprep.subr.mxu0 0.0
        %646 = vmatpush1.msra.mxu0 0.0
        %647 = vmatprep.subr.mxu0 0.0
        %648 = vmatpush1.msra.mxu0 0.0
        %649 = vmatprep.subr.mxu0 0.0
        %650 = vmatpush1.msra.mxu0 0.0
        %651 = vmatprep.subr.mxu0 0.0
        %652 = vmatpush1.msra.mxu0 0.0
        %653 = vmatprep.subr.mxu0 0.0
        %654 = vmatpush1.msra.mxu0 0.0
        %655 = vmatprep.subr.mxu0 0.0
        %656 = vmatpush1.msra.mxu0 0.0
        %657 = vmatprep.subr.mxu0 0.0
        %658 = vmatpush1.msra.mxu0 0.0
        %659 = vmatprep.subr.mxu0 0.0
        %660 = vmatpush1.msra.mxu0 0.0
        %661 = vmatprep.subr.mxu0 0.0
        %662 = vmatpush1.msra.mxu0 0.0
        %663 = vmatprep.subr.mxu0 0.0
        %664 = vmatpush1.msra.mxu0 0.0
        %665 = vmatprep.subr.mxu0 0.0
        %666 = vmatpush1.msra.mxu0 0.0
        %667 = vmatprep.subr.mxu0 0.0
        %668 = vmatpush1.msra.mxu0 0.0
        %669 = vmatprep.subr.mxu0 0.0
        %670 = vmatpush1.msra.mxu0 0.0
        %671 = vmatprep.subr.mxu0 0.0
        %672 = vmatpush1.msra.mxu0 0.0
        %673 = vmatprep.subr.mxu0 0.0
        %674 = vmatpush1.msra.mxu0 0.0
        %675 = vmatprep.subr.mxu0 0.0
        %676 = vmatpush1.msra.mxu0 0.0
        %677 = vmatprep.subr.mxu0 0.0
        %678 = vmatpush1.msra.mxu0 0.0
        %679 = vmatprep.subr.mxu0 0.0
        %680 = vmatpush1.msra.mxu0 0.0
        %681 = vmatprep.subr.mxu0 0.0
        %682 = vmatpush1.msra.mxu0 0.0
        %683 = vmatprep.subr.mxu0 0.0
        %684 = vmatpush1.msra.mxu0 0.0
        %685 = vmatprep.subr.mxu0 0.0
        %686 = vmatpush1.msra.mxu0 0.0
        %687 = vmatprep.mubr.f32.mxu0 0.0
        %688 = vmatmul.mubr.f32.gmra.mrb[0].mxu0 %v407
        %v689 = vpop.f32.mrb[0].mxu0
        %v690 = vadd.f32 %v388, %v689
        %v691 = vpop.f32.mrb[0].mxu0
        %692 = vmatprep.mubr.f32.mxu0 0.0
        %693 = vmatmul.mubr.f32.gmra.mrb[0].mxu0 %v410
        %v694 = vpop.f32.mrb[0].mxu0
        %v695 = vadd.f32 %v393, %v694
        %v696 = vpop.f32.mrb[0].mxu0
        %697 = vmatprep.mubr.f32.mxu0 0.0
        %698 = vmatmul.mubr.f32.gmra.mrb[0].mxu0 %v413
        %v699 = vpop.f32.mrb[0].mxu0
        %v700 = vadd.f32 %v398, %v699
        %v701 = vpop.f32.mrb[0].mxu0
        %702 = vmatprep.mubr.f32.mxu0 0.0
        %703 = vmatmul.mubr.f32.gmra.mrb[0].mxu0 %v416
        %v704 = vpop.f32.mrb[0].mxu0
        %v705 = vadd.f32 %v403, %v704
        %v706 = vpop.f32.mrb[0].mxu0
        %707 = vdwg.mxu0
        %v708 = vtanh.pop %v690
        %v709 = vtanh.pop %v695
        %v710 = vtanh.pop %v700
        %v711 = vtanh.pop %v705
        %712 = vmatprep.subr.mxu0 0.0
        %713 = vmatpush1.msra.mxu0 %v708
        %714 = vmatprep.subr.mxu0 0.0
        %715 = vmatpush1.msra.mxu0 %v709
        %716 = vmatprep.subr.mxu0 0.0
        %717 = vmatpush1.msra.mxu0 %v710
        %718 = vmatprep.subr.mxu0 0.0
        %719 = vmatpush1.msra.mxu0 %v711
        %720 = vmatprep.subr.mxu0 0.0
        %721 = vmatpush1.msra.mxu0 0.0
        %722 = vmatprep.subr.mxu0 0.0
        %723 = vmatpush1.msra.mxu0 0.0
        %724 = vmatprep.subr.mxu0 0.0
        %725 = vmatpush1.msra.mxu0 0.0
        %726 = vmatprep.subr.mxu0 0.0
        %727 = vmatpush1.msra.mxu0 0.0
        %728 = vmatprep.subr.mxu0 0.0
        %729 = vmatpush1.msra.mxu0 0.0
        %730 = vmatprep.subr.mxu0 0.0
        %731 = vmatpush1.msra.mxu0 0.0
        %732 = vmatprep.subr.mxu0 0.0
        %733 = vmatpush1.msra.mxu0 0.0
        %734 = vmatprep.subr.mxu0 0.0
        %735 = vmatpush1.msra.mxu0 0.0
        %736 = vmatprep.subr.mxu0 0.0
        %737 = vmatpush1.msra.mxu0 0.0
        %738 = vmatprep.subr.mxu0 0.0
        %739 = vmatpush1.msra.mxu0 0.0
        %740 = vmatprep.subr.mxu0 0.0
        %741 = vmatpush1.msra.mxu0 0.0
        %742 = vmatprep.subr.mxu0 0.0
        %743 = vmatpush1.msra.mxu0 0.0
        %744 = vmatprep.subr.mxu0 0.0
        %745 = vmatpush1.msra.mxu0 0.0
        %746 = vmatprep.subr.mxu0 0.0
        %747 = vmatpush1.msra.mxu0 0.0
        %748 = vmatprep.subr.mxu0 0.0
        %749 = vmatpush1.msra.mxu0 0.0
        %750 = vmatprep.subr.mxu0 0.0
        %751 = vmatpush1.msra.mxu0 0.0
        %752 = vmatprep.subr.mxu0 0.0
        %753 = vmatpush1.msra.mxu0 0.0
        %754 = vmatprep.subr.mxu0 0.0
        %755 = vmatpush1.msra.mxu0 0.0
        %756 = vmatprep.subr.mxu0 0.0
        %757 = vmatpush1.msra.mxu0 0.0
        %758 = vmatprep.subr.mxu0 0.0
        %759 = vmatpush1.msra.mxu0 0.0
        %760 = vmatprep.subr.mxu0 0.0
        %761 = vmatpush1.msra.mxu0 0.0
        %762 = vmatprep.subr.mxu0 0.0
        %763 = vmatpush1.msra.mxu0 0.0
        %764 = vmatprep.subr.mxu0 0.0
        %765 = vmatpush1.msra.mxu0 0.0
        %766 = vmatprep.subr.mxu0 0.0
        %767 = vmatpush1.msra.mxu0 0.0
        %768 = vmatprep.subr.mxu0 0.0
        %769 = vmatpush1.msra.mxu0 0.0
        %770 = vmatprep.subr.mxu0 0.0
        %771 = vmatpush1.msra.mxu0 0.0
        %772 = vmatprep.subr.mxu0 0.0
        %773 = vmatpush1.msra.mxu0 0.0
        %774 = vmatprep.subr.mxu0 0.0
        %775 = vmatpush1.msra.mxu0 0.0
        %776 = vmatprep.mubr.f32.mxu0 0.0
        %777 = vmatmul.mubr.f32.gmra.mrb[0].mxu0 %v517
        %v778 = vpop.f32.mrb[0].mxu0
        %v779 = vadd.f32 %v515, %v778
        %v780 = vpop.f32.mrb[0].mxu0
        %781 = vdwg.mxu0
        %782 = vst.msk [vmem:[%s274 + $0x1] sm:$0x1] %vm592, %v779
        %v783 = vld [vmem:[%s279 + $0x4] sm:$0x3]
        %v784 = vlaneseq
        %v785 = vshrl.u32 %v784, 7
        %v786 = vsub.s32 0, %v785
        %v787 = vrot.slane %v783, %v786
        %v788 = vmul.f32 %v304, %v787
        %v789 = vmul.f32 %v309, %v787
        %v790 = vmul.f32 %v314, %v787
        %v791 = vmul.f32 %v319, %v787
        %v792 = vadd.f32 %v332, %v788
        %v793 = vadd.f32 %v337, %v789
        %v794 = vadd.f32 %v342, %v790
        %v795 = vadd.f32 %v347, %v791
        %v796 = vlaneseq
        %v797 = vshrl.u32 %v796, 7
        %v798 = vsub.s32 1, %v797
        %v799 = vrot.slane %v783, %v798
        %v800 = vmul.f32 %v355, %v799
        %v801 = vmul.f32 %v359, %v799
        %v802 = vmul.f32 %v363, %v799
        %v803 = vmul.f32 %v367, %v799
        %v804 = vadd.f32 %v792, %v800
        %v805 = vadd.f32 %v793, %v801
        %v806 = vadd.f32 %v794, %v802
        %v807 = vadd.f32 %v795, %v803
        %v808 = vtanh.pop %v804
        %v809 = vtanh.pop %v805
        %v810 = vtanh.pop %v806
        %v811 = vtanh.pop %v807
        %812 = vmatprep.subr.mxu0 0.0
        %813 = vmatpush1.msra.mxu0 %v808
        %814 = vmatprep.subr.mxu0 0.0
        %815 = vmatpush1.msra.mxu0 %v809
        %816 = vmatprep.subr.mxu0 0.0
        %817 = vmatpush1.msra.mxu0 %v810
        %818 = vmatprep.subr.mxu0 0.0
        %819 = vmatpush1.msra.mxu0 %v811
        %820 = vmatprep.subr.mxu0 0.0
        %821 = vmatpush1.msra.mxu0 0.0
        %822 = vmatprep.subr.mxu0 0.0
        %823 = vmatpush1.msra.mxu0 0.0
        %824 = vmatprep.subr.mxu0 0.0
        %825 = vmatpush1.msra.mxu0 0.0
        %826 = vmatprep.subr.mxu0 0.0
        %827 = vmatpush1.msra.mxu0 0.0
        %828 = vmatprep.subr.mxu0 0.0
        %829 = vmatpush1.msra.mxu0 0.0
        %830 = vmatprep.subr.mxu0 0.0
        %831 = vmatpush1.msra.mxu0 0.0
        %832 = vmatprep.subr.mxu0 0.0
        %833 = vmatpush1.msra.mxu0 0.0
        %834 = vmatprep.subr.mxu0 0.0
        %835 = vmatpush1.msra.mxu0 0.0
        %836 = vmatprep.subr.mxu0 0.0
        %837 = vmatpush1.msra.mxu0 0.0
        %838 = vmatprep.subr.mxu0 0.0
        %839 = vmatpush1.msra.mxu0 0.0
        %840 = vmatprep.subr.mxu0 0.0
        %841 = vmatpush1.msra.mxu0 0.0
        %842 = vmatprep.subr.mxu0 0.0
        %843 = vmatpush1.msra.mxu0 0.0
        %844 = vmatprep.subr.mxu0 0.0
        %845 = vmatpush1.msra.mxu0 0.0
        %846 = vmatprep.subr.mxu0 0.0
        %847 = vmatpush1.msra.mxu0 0.0
        %848 = vmatprep.subr.mxu0 0.0
        %849 = vmatpush1.msra.mxu0 0.0
        %850 = vmatprep.subr.mxu0 0.0
        %851 = vmatpush1.msra.mxu0 0.0
        %852 = vmatprep.subr.mxu0 0.0
        %853 = vmatpush1.msra.mxu0 0.0
        %854 = vmatprep.subr.mxu0 0.0
        %855 = vmatpush1.msra.mxu0 0.0
        %856 = vmatprep.subr.mxu0 0.0
        %857 = vmatpush1.msra.mxu0 0.0
        %858 = vmatprep.subr.mxu0 0.0
        %859 = vmatpush1.msra.mxu0 0.0
        %860 = vmatprep.subr.mxu0 0.0
        %861 = vmatpush1.msra.mxu0 0.0
        %862 = vmatprep.subr.mxu0 0.0
        %863 = vmatpush1.msra.mxu0 0.0
        %864 = vmatprep.subr.mxu0 0.0
        %865 = vmatpush1.msra.mxu0 0.0
        %866 = vmatprep.subr.mxu0 0.0
        %867 = vmatpush1.msra.mxu0 0.0
        %868 = vmatprep.subr.mxu0 0.0
        %869 = vmatpush1.msra.mxu0 0.0
        %870 = vmatprep.subr.mxu0 0.0
        %871 = vmatpush1.msra.mxu0 0.0
        %872 = vmatprep.subr.mxu0 0.0
        %873 = vmatpush1.msra.mxu0 0.0
        %874 = vmatprep.subr.mxu0 0.0
        %875 = vmatpush1.msra.mxu0 0.0
        %876 = vmatprep.mubr.f32.mxu0 0.0
        %877 = vmatmul.mubr.f32.gmra.mrb[0].mxu0 %v407
        %v878 = vpop.f32.mrb[0].mxu0
        %v879 = vadd.f32 %v388, %v878
        %v880 = vpop.f32.mrb[0].mxu0
        %881 = vmatprep.mubr.f32.mxu0 0.0
        %882 = vmatmul.mubr.f32.gmra.mrb[0].mxu0 %v410
        %v883 = vpop.f32.mrb[0].mxu0
        %v884 = vadd.f32 %v393, %v883
        %v885 = vpop.f32.mrb[0].mxu0
        %886 = vmatprep.mubr.f32.mxu0 0.0
        %887 = vmatmul.mubr.f32.gmra.mrb[0].mxu0 %v413
        %v888 = vpop.f32.mrb[0].mxu0
        %v889 = vadd.f32 %v398, %v888
        %v890 = vpop.f32.mrb[0].mxu0
        %891 = vmatprep.mubr.f32.mxu0 0.0
        %892 = vmatmul.mubr.f32.gmra.mrb[0].mxu0 %v416
        %v893 = vpop.f32.mrb[0].mxu0
        %v894 = vadd.f32 %v403, %v893
        %v895 = vpop.f32.mrb[0].mxu0
        %896 = vdwg.mxu0
        %v897 = vtanh.pop %v879
        %v898 = vtanh.pop %v884
        %v899 = vtanh.pop %v889
        %v900 = vtanh.pop %v894
        %901 = vmatprep.subr.mxu0 0.0
        %902 = vmatpush1.msra.mxu0 %v897
        %903 = vmatprep.subr.mxu0 0.0
        %904 = vmatpush1.msra.mxu0 %v898
        %905 = vmatprep.subr.mxu0 0.0
        %906 = vmatpush1.msra.mxu0 %v899
        %907 = vmatprep.subr.mxu0 0.0
        %908 = vmatpush1.msra.mxu0 %v900
        %909 = vmatprep.subr.mxu0 0.0
        %910 = vmatpush1.msra.mxu0 0.0
        %911 = vmatprep.subr.mxu0 0.0
        %912 = vmatpush1.msra.mxu0 0.0
        %913 = vmatprep.subr.mxu0 0.0
        %914 = vmatpush1.msra.mxu0 0.0
        %915 = vmatprep.subr.mxu0 0.0
        %916 = vmatpush1.msra.mxu0 0.0
        %917 = vmatprep.subr.mxu0 0.0
        %918 = vmatpush1.msra.mxu0 0.0
        %919 = vmatprep.subr.mxu0 0.0
        %920 = vmatpush1.msra.mxu0 0.0
        %921 = vmatprep.subr.mxu0 0.0
        %922 = vmatpush1.msra.mxu0 0.0
        %923 = vmatprep.subr.mxu0 0.0
        %924 = vmatpush1.msra.mxu0 0.0
        %925 = vmatprep.subr.mxu0 0.0
        %926 = vmatpush1.msra.mxu0 0.0
        %927 = vmatprep.subr.mxu0 0.0
        %928 = vmatpush1.msra.mxu0 0.0
        %929 = vmatprep.subr.mxu0 0.0
        %930 = vmatpush1.msra.mxu0 0.0
        %931 = vmatprep.subr.mxu0 0.0
        %932 = vmatpush1.msra.mxu0 0.0
        %933 = vmatprep.subr.mxu0 0.0
        %934 = vmatpush1.msra.mxu0 0.0
        %935 = vmatprep.subr.mxu0 0.0
        %936 = vmatpush1.msra.mxu0 0.0
        %937 = vmatprep.subr.mxu0 0.0
        %938 = vmatpush1.msra.mxu0 0.0
        %939 = vmatprep.subr.mxu0 0.0
        %940 = vmatpush1.msra.mxu0 0.0
        %941 = vmatprep.subr.mxu0 0.0
        %942 = vmatpush1.msra.mxu0 0.0
        %943 = vmatprep.subr.mxu0 0.0
        %944 = vmatpush1.msra.mxu0 0.0
        %945 = vmatprep.subr.mxu0 0.0
        %946 = vmatpush1.msra.mxu0 0.0
        %947 = vmatprep.subr.mxu0 0.0
        %948 = vmatpush1.msra.mxu0 0.0
        %949 = vmatprep.subr.mxu0 0.0
        %950 = vmatpush1.msra.mxu0 0.0
        %951 = vmatprep.subr.mxu0 0.0
        %952 = vmatpush1.msra.mxu0 0.0
        %953 = vmatprep.subr.mxu0 0.0
        %954 = vmatpush1.msra.mxu0 0.0
        %955 = vmatprep.subr.mxu0 0.0
        %956 = vmatpush1.msra.mxu0 0.0
        %957 = vmatprep.subr.mxu0 0.0
        %958 = vmatpush1.msra.mxu0 0.0
        %959 = vmatprep.subr.mxu0 0.0
        %960 = vmatpush1.msra.mxu0 0.0
        %961 = vmatprep.subr.mxu0 0.0
        %962 = vmatpush1.msra.mxu0 0.0
        %963 = vmatprep.subr.mxu0 0.0
        %964 = vmatpush1.msra.mxu0 0.0
        %965 = vmatprep.mubr.f32.mxu0 0.0
        %966 = vmatmul.mubr.f32.gmra.mrb[0].mxu0 %v517
        %v967 = vpop.f32.mrb[0].mxu0
        %v968 = vadd.f32 %v515, %v967
        %v969 = vpop.f32.mrb[0].mxu0
        %970 = vdwg.mxu0
        %971 = vst.msk [vmem:[%s274 + $0x2] sm:$0x1] %vm592, %v968
        %v972 = vld [vmem:[%s279 + $0x6] sm:$0x3]
        %v973 = vlaneseq
        %v974 = vshrl.u32 %v973, 7
        %v975 = vsub.s32 0, %v974
        %v976 = vrot.slane %v972, %v975
        %v977 = vmul.f32 %v304, %v976
        %v978 = vmul.f32 %v309, %v976
        %v979 = vmul.f32 %v314, %v976
        %v980 = vmul.f32 %v319, %v976
        %v981 = vadd.f32 %v332, %v977
        %v982 = vadd.f32 %v337, %v978
        %v983 = vadd.f32 %v342, %v979
        %v984 = vadd.f32 %v347, %v980
        %v985 = vlaneseq
        %v986 = vshrl.u32 %v985, 7
        %v987 = vsub.s32 1, %v986
        %v988 = vrot.slane %v972, %v987
        %v989 = vmul.f32 %v355, %v988
        %v990 = vmul.f32 %v359, %v988
        %v991 = vmul.f32 %v363, %v988
        %v992 = vmul.f32 %v367, %v988
        %v993 = vadd.f32 %v981, %v989
        %v994 = vadd.f32 %v982, %v990
        %v995 = vadd.f32 %v983, %v991
        %v996 = vadd.f32 %v984, %v992
        %v997 = vtanh.pop %v993
        %v998 = vtanh.pop %v994
        %v999 = vtanh.pop %v995
        %v1000 = vtanh.pop %v996
        %1001 = vmatprep.subr.mxu0 0.0
        %1002 = vmatpush1.msra.mxu0 %v997
        %1003 = vmatprep.subr.mxu0 0.0
        %1004 = vmatpush1.msra.mxu0 %v998
        %1005 = vmatprep.subr.mxu0 0.0
        %1006 = vmatpush1.msra.mxu0 %v999
        %1007 = vmatprep.subr.mxu0 0.0
        %1008 = vmatpush1.msra.mxu0 %v1000
        %1009 = vmatprep.subr.mxu0 0.0
        %1010 = vmatpush1.msra.mxu0 0.0
        %1011 = vmatprep.subr.mxu0 0.0
        %1012 = vmatpush1.msra.mxu0 0.0
        %1013 = vmatprep.subr.mxu0 0.0
        %1014 = vmatpush1.msra.mxu0 0.0
        %1015 = vmatprep.subr.mxu0 0.0
        %1016 = vmatpush1.msra.mxu0 0.0
        %1017 = vmatprep.subr.mxu0 0.0
        %1018 = vmatpush1.msra.mxu0 0.0
        %1019 = vmatprep.subr.mxu0 0.0
        %1020 = vmatpush1.msra.mxu0 0.0
        %1021 = vmatprep.subr.mxu0 0.0
        %1022 = vmatpush1.msra.mxu0 0.0
        %1023 = vmatprep.subr.mxu0 0.0
        %1024 = vmatpush1.msra.mxu0 0.0
        %1025 = vmatprep.subr.mxu0 0.0
        %1026 = vmatpush1.msra.mxu0 0.0
        %1027 = vmatprep.subr.mxu0 0.0
        %1028 = vmatpush1.msra.mxu0 0.0
        %1029 = vmatprep.subr.mxu0 0.0
        %1030 = vmatpush1.msra.mxu0 0.0
        %1031 = vmatprep.subr.mxu0 0.0
        %1032 = vmatpush1.msra.mxu0 0.0
        %1033 = vmatprep.subr.mxu0 0.0
        %1034 = vmatpush1.msra.mxu0 0.0
        %1035 = vmatprep.subr.mxu0 0.0
        %1036 = vmatpush1.msra.mxu0 0.0
        %1037 = vmatprep.subr.mxu0 0.0
        %1038 = vmatpush1.msra.mxu0 0.0
        %1039 = vmatprep.subr.mxu0 0.0
        %1040 = vmatpush1.msra.mxu0 0.0
        %1041 = vmatprep.subr.mxu0 0.0
        %1042 = vmatpush1.msra.mxu0 0.0
        %1043 = vmatprep.subr.mxu0 0.0
        %1044 = vmatpush1.msra.mxu0 0.0
        %1045 = vmatprep.subr.mxu0 0.0
        %1046 = vmatpush1.msra.mxu0 0.0
        %1047 = vmatprep.subr.mxu0 0.0
        %1048 = vmatpush1.msra.mxu0 0.0
        %1049 = vmatprep.subr.mxu0 0.0
        %1050 = vmatpush1.msra.mxu0 0.0
        %1051 = vmatprep.subr.mxu0 0.0
        %1052 = vmatpush1.msra.mxu0 0.0
        %1053 = vmatprep.subr.mxu0 0.0
        %1054 = vmatpush1.msra.mxu0 0.0
        %1055 = vmatprep.subr.mxu0 0.0
        %1056 = vmatpush1.msra.mxu0 0.0
        %1057 = vmatprep.subr.mxu0 0.0
        %1058 = vmatpush1.msra.mxu0 0.0
        %1059 = vmatprep.subr.mxu0 0.0
        %1060 = vmatpush1.msra.mxu0 0.0
        %1061 = vmatprep.subr.mxu0 0.0
        %1062 = vmatpush1.msra.mxu0 0.0
        %1063 = vmatprep.subr.mxu0 0.0
        %1064 = vmatpush1.msra.mxu0 0.0
        %1065 = vmatprep.mubr.f32.mxu0 0.0
        %1066 = vmatmul.mubr.f32.gmra.mrb[0].mxu0 %v407
        %v1067 = vpop.f32.mrb[0].mxu0
        %v1068 = vadd.f32 %v388, %v1067
        %v1069 = vpop.f32.mrb[0].mxu0
        %1070 = vmatprep.mubr.f32.mxu0 0.0
        %1071 = vmatmul.mubr.f32.gmra.mrb[0].mxu0 %v410
        %v1072 = vpop.f32.mrb[0].mxu0
        %v1073 = vadd.f32 %v393, %v1072
        %v1074 = vpop.f32.mrb[0].mxu0
        %1075 = vmatprep.mubr.f32.mxu0 0.0
        %1076 = vmatmul.mubr.f32.gmra.mrb[0].mxu0 %v413
        %v1077 = vpop.f32.mrb[0].mxu0
        %v1078 = vadd.f32 %v398, %v1077
        %v1079 = vpop.f32.mrb[0].mxu0
        %1080 = vmatprep.mubr.f32.mxu0 0.0
        %1081 = vmatmul.mubr.f32.gmra.mrb[0].mxu0 %v416
        %v1082 = vpop.f32.mrb[0].mxu0
        %v1083 = vadd.f32 %v403, %v1082
        %v1084 = vpop.f32.mrb[0].mxu0
        %1085 = vdwg.mxu0
        %v1086 = vtanh.pop %v1068
        %v1087 = vtanh.pop %v1073
        %v1088 = vtanh.pop %v1078
        %v1089 = vtanh.pop %v1083
        %1090 = vmatprep.subr.mxu0 0.0
        %1091 = vmatpush1.msra.mxu0 %v1086
        %1092 = vmatprep.subr.mxu0 0.0
        %1093 = vmatpush1.msra.mxu0 %v1087
        %1094 = vmatprep.subr.mxu0 0.0
        %1095 = vmatpush1.msra.mxu0 %v1088
        %1096 = vmatprep.subr.mxu0 0.0
        %1097 = vmatpush1.msra.mxu0 %v1089
        %1098 = vmatprep.subr.mxu0 0.0
        %1099 = vmatpush1.msra.mxu0 0.0
        %1100 = vmatprep.subr.mxu0 0.0
        %1101 = vmatpush1.msra.mxu0 0.0
        %1102 = vmatprep.subr.mxu0 0.0
        %1103 = vmatpush1.msra.mxu0 0.0
        %1104 = vmatprep.subr.mxu0 0.0
        %1105 = vmatpush1.msra.mxu0 0.0
        %1106 = vmatprep.subr.mxu0 0.0
        %1107 = vmatpush1.msra.mxu0 0.0
        %1108 = vmatprep.subr.mxu0 0.0
        %1109 = vmatpush1.msra.mxu0 0.0
        %1110 = vmatprep.subr.mxu0 0.0
        %1111 = vmatpush1.msra.mxu0 0.0
        %1112 = vmatprep.subr.mxu0 0.0
        %1113 = vmatpush1.msra.mxu0 0.0
        %1114 = vmatprep.subr.mxu0 0.0
        %1115 = vmatpush1.msra.mxu0 0.0
        %1116 = vmatprep.subr.mxu0 0.0
        %1117 = vmatpush1.msra.mxu0 0.0
        %1118 = vmatprep.subr.mxu0 0.0
        %1119 = vmatpush1.msra.mxu0 0.0
        %1120 = vmatprep.subr.mxu0 0.0
        %1121 = vmatpush1.msra.mxu0 0.0
        %1122 = vmatprep.subr.mxu0 0.0
        %1123 = vmatpush1.msra.mxu0 0.0
        %1124 = vmatprep.subr.mxu0 0.0
        %1125 = vmatpush1.msra.mxu0 0.0
        %1126 = vmatprep.subr.mxu0 0.0
        %1127 = vmatpush1.msra.mxu0 0.0
        %1128 = vmatprep.subr.mxu0 0.0
        %1129 = vmatpush1.msra.mxu0 0.0
        %1130 = vmatprep.subr.mxu0 0.0
        %1131 = vmatpush1.msra.mxu0 0.0
        %1132 = vmatprep.subr.mxu0 0.0
        %1133 = vmatpush1.msra.mxu0 0.0
        %1134 = vmatprep.subr.mxu0 0.0
        %1135 = vmatpush1.msra.mxu0 0.0
        %1136 = vmatprep.subr.mxu0 0.0
        %1137 = vmatpush1.msra.mxu0 0.0
        %1138 = vmatprep.subr.mxu0 0.0
        %1139 = vmatpush1.msra.mxu0 0.0
        %1140 = vmatprep.subr.mxu0 0.0
        %1141 = vmatpush1.msra.mxu0 0.0
        %1142 = vmatprep.subr.mxu0 0.0
        %1143 = vmatpush1.msra.mxu0 0.0
        %1144 = vmatprep.subr.mxu0 0.0
        %1145 = vmatpush1.msra.mxu0 0.0
        %1146 = vmatprep.subr.mxu0 0.0
        %1147 = vmatpush1.msra.mxu0 0.0
        %1148 = vmatprep.subr.mxu0 0.0
        %1149 = vmatpush1.msra.mxu0 0.0
        %1150 = vmatprep.subr.mxu0 0.0
        %1151 = vmatpush1.msra.mxu0 0.0
        %1152 = vmatprep.subr.mxu0 0.0
        %1153 = vmatpush1.msra.mxu0 0.0
        %1154 = vmatprep.mubr.f32.mxu0 0.0
        %1155 = vmatmul.mubr.f32.gmra.mrb[0].mxu0 %v517
        %v1156 = vpop.f32.mrb[0].mxu0
        %v1157 = vadd.f32 %v515, %v1156
        %v1158 = vpop.f32.mrb[0].mxu0
        %1159 = vdwg.mxu0
        %1160 = vst.msk [vmem:[%s274 + $0x3] sm:$0x1] %vm592, %v1157
        %s1161 = sand.u32 %s183, 1
        %s1162 = scalar_lea.sflag [#allocation4], %s1161
        %s1163 = sand.u32 %s183, 1
        %s1164 = smul.addr %s1163, 4
        %s1165 = scalar_lea.vmem [#allocation3], %s1164
        // Predicated region
        $region49: #{net1d_forward_xt.1} parent=47 // pred_check
          %p1166 = pneg %p193
        $region50: #{net1d_forward_xt.1} parent=47 // pred_check_branch
          %1168 = sbr.rel (%p1166) target = $region52
        $region51: #{net1d_forward_xt.1} parent=47 // pred_region
          %s1169 = smul.u32 4, %s23
          %s1171 = ssub.s32 64, 64
          %1172 = vsyncadd %s1162, %s1171
          %s1173 = smul.addr %s1169, 16
          %s1174 = scalar_lea.hbm %s7, %s1173
          %s1176 = sshll.u32 %s1165, 4
          %s1177 = int_to_ptr.vmem [resolvable:$true] %s1176
          %1179 = dma.vmem_to_hbm [thread:$0]  %s1177, 64, %s1174, %s1162
        $region52: #{net1d_forward_xt.1} parent=47 // pred_fallthru
          _
      $region48: #{net1d_forward_xt.1} parent=5 // pred_fallthru
        _
      %p1180 = scmp.le.s32.totalorder 2, %s18
      // Predicated region
      $region53: #{net1d_forward_xt.1} parent=5 // pred_check
        %p1181 = pneg %p1180
      $region54: #{net1d_forward_xt.1} parent=5 // pred_check_branch
        %1183 = sbr.rel (%p1181) target = $region56
      $region55: #{net1d_forward_xt.1} parent=5 // pred_region
        %s1184 = ssub.s32 %s18, 2
        // Predicated region
        $region57: #{net1d_forward_xt.1} parent=55 // pred_check
          %p1185 = pneg %p199
        $region58: #{net1d_forward_xt.1} parent=55 // pred_check_branch
          %1187 = sbr.rel (%p1185) target = $region60
        $region59: #{net1d_forward_xt.1} parent=55 // pred_region
          %s1188 = sand.u32 %s184, 1
          %s1189 = scalar_lea.sflag [#allocation4], %s1188
          %s1190 = sand.u32 %s184, 1
          %s1191 = smul.addr %s1190, 4
          %s1192 = scalar_lea.vmem [#allocation3], %s1191
          %1193 = dma.done %s1189, 64
        $region60: #{net1d_forward_xt.1} parent=55 // pred_fallthru
          _
      $region56: #{net1d_forward_xt.1} parent=5 // pred_fallthru
        _
    $region6: #{net1d_forward_xt.1} parent=1 // loop_footer
      %s22 = sadd.s32 1, %s18
    $region7: #{net1d_forward_xt.1} parent=1 // loop_footer_branch
      %17 = sbr.rel target = $region3
    $region8: #{net1d_forward_xt.1} parent=1 // loop_exit
      _
    %1194 = vsyncpa [#allocation4], 1
    %s1195 = scalar_lea.sflag [#allocation4], 1
    %1196 = vsyncpa %s1195, 1

</llo_original>
